<compile_context>
chip_gen: v7x
topology: tpu7x:2x2x1
jax: 0.10.0
libtpu: 0.0.40
codegen_flags: <defaults>
</compile_context>

<pallas_src>
import functools

import jax
import jax.numpy as jnp
from jax.experimental import pallas as pl
from jax.experimental.pallas import tpu as pltpu

_EPS = 1e-5


# --------------------------------------------------------------------------
# VMEM sizing helpers
# --------------------------------------------------------------------------
def _vmem_limits():
    """Returns (vmem_limit_bytes for CompilerParams, per-step footprint budget)."""
    cap = 0
    try:
        cap = int(getattr(pltpu.get_tpu_info(), "vmem_capacity_bytes", 0) or 0)
    except Exception:
        cap = 0
    if not cap:
        kind = ""
        try:
            kind = jax.devices()[0].device_kind.lower()
        except Exception:
            pass
        if "v7" in kind:
            cap = 64 << 20
        elif "v2" in kind or "v3" in kind:
            cap = 16 << 20
        else:                                   # v4 / v5e / v5p / v6e
            cap = 128 << 20
    headroom = (8 << 20) if cap >= (64 << 20) else (2 << 20)
    limit = max(16 << 20, min(cap - headroom, 120 << 20))
    budget = max(limit - (4 << 20), limit // 2)     # no double discount
    return int(limit), int(budget)


def _divisors(n):
    return [d for d in range(1, n + 1) if n % d == 0]


def _choose_stats_tile(n, c, isz, budget, bsz):
    """Largest divisor of N (multiple of 8 or == N) whose stats block fits VMEM."""
    cands = [d for d in _divisors(n) if d % 8 == 0 or d == n]

    def foot(tn):   # 2 inputs x 2 buffers (native dtype) + f32 temporaries
        return tn * c * (4 * isz + 12) + (1 << 20)

    fits = [tn for tn in cands if foot(tn) <= budget]
    best = max(fits) if fits else min(cands)
    # keep both TensorCores busy when bsz is tiny
    if bsz * (n // best) < 2:
        split = [tn for tn in (fits if fits else cands) if (n // tn) >= 2]
        if split:
            best = max(split)
    return best


def _choose_rows_per_step(h, w, c, ncls, isz, osz, budget, channel_major, bsz):
    """R = image-row-pairs per grid step; rows = 2*R*w sublanes per block."""
    half = h // 2
    n = h * w

    def rows_of(r):
        return 2 * r * w

    def foot(r):
        rows = rows_of(r)
        # double-buffered ins/outs + rm_buf scratch + f32 in-kernel temporaries
        per_elem = 4 * isz + 5 * osz + 24
        return rows * c * per_elem + 4 * ncls * rows * osz + (2 << 20)

    cands = []
    for r in _divisors(half):
        rows = rows_of(r)
        if r > 1 and w % 8:
            continue            # in-kernel (rows,c)->(R,2w,c) reshape wants w % 8 == 0
        if channel_major:
            # rows is the LAST dim of the cat/cls output blocks -> must be a
            # multiple of 128 or the full extent n (BlockSpec legality, not perf).
            ok = (rows == n) or (rows % 128 == 0)
        else:
            ok = (rows == n) or (rows % 8 == 0)
        if ok:
            cands.append(r)
    if not cands:
        cands = [half]          # rows == n is always legal

    fits = [r for r in cands if foot(r) <= budget]
    # If nothing fits the budget, take the smallest *legal* block (still correct;
    # the conservative footprint model usually over-estimates) instead of the
    # whole image.
    best = max(fits) if fits else min(cands)

    # v7x megacore: give both TensorCores work when bsz * nsteps would be < 2.
    if bsz * (half // best) < 2:
        split = [r for r in (fits if fits else cands) if (half // r) >= 2]
        if split:
            best = max(split)
    return best


# --------------------------------------------------------------------------
# Kernel 1: per-(batch, N-tile) centered moments for x and res (native dtype in,
# f32 accumulation).  Fully parallel grid -> megacore friendly.
# --------------------------------------------------------------------------
def _stats_kernel(x_ref, r_ref, mx_ref, m2x_ref, mr_ref, m2r_ref):
    xb = x_ref[0].astype(jnp.float32)               # (TN, C)
    rb = r_ref[0].astype(jnp.float32)
    inv = 1.0 / xb.shape[0]
    mx = jnp.sum(xb, axis=0, keepdims=True) * inv   # (1, C) tile mean
    mr = jnp.sum(rb, axis=0, keepdims=True) * inv
    dx = xb - mx
    dr = rb - mr
    mx_ref[0, 0] = mx
    m2x_ref[0, 0] = jnp.sum(dx * dx, axis=0, keepdims=True)
    mr_ref[0, 0] = mr
    m2r_ref[0, 0] = jnp.sum(dr * dr, axis=0, keepdims=True)


def _fold_bn(mean_t, m2_t, gamma, beta, tile_count, total_count, c):
    """Chan-combine per-tile moments, fold BN to scale/shift (biased var)."""
    mean_t = mean_t.reshape(-1, c).astype(jnp.float32)
    m2_t = m2_t.reshape(-1, c).astype(jnp.float32)
    mean = jnp.mean(mean_t, axis=0)                 # equal tile counts -> exact
    d = mean_t - mean
    var = (jnp.sum(m2_t, axis=0) + tile_count * jnp.sum(d * d, axis=0)) / total_count
    scale = gamma.reshape(c).astype(jnp.float32) / jnp.sqrt(var + _EPS)
    shift = beta.reshape(c).astype(jnp.float32) - mean * scale
    return scale.reshape(1, c), shift.reshape(1, c)


# --------------------------------------------------------------------------
# Kernel 2: fused normalize + (channel-major) concat write + split 1x1 conv
#           (MXU) + 2x2 max-pool.  Grid = (batch, (H/2)//R); each step handles
#           2*R image rows flattened to (rows, C).
# --------------------------------------------------------------------------
def _main_kernel(R, w, c, channel_major,
                 x_ref, r_ref, ax_ref, bx_ref, ar_ref, br_ref,
                 wx_ref, wr_ref, bc_ref,
                 cat_ref, cls_ref, pool_ref, rm_buf):
    f32 = jnp.float32
    xn = x_ref[0].astype(f32) * ax_ref[...] + bx_ref[...]   # folded BatchNorm(x)
    rn = r_ref[0].astype(f32) * ar_ref[...] + br_ref[...]   # folded BatchNorm(res)

    if channel_major:
        # In-tile transposes (XLU): catted / cls are written NCHW-compatible, so the
        # wrapper does only free reshapes.  The 1x1 conv is fed from the just-written
        # cat block (no separate transposed temporaries in VMEM).
        cat_ref[0, :c, :] = xn.T.astype(cat_ref.dtype)
        cat_ref[0, c:, :] = rn.T.astype(cat_ref.dtype)
        acc = (jnp.dot(wx_ref[...], cat_ref[0, :c, :], preferred_element_type=f32)
               + jnp.dot(wr_ref[...], cat_ref[0, c:, :], preferred_element_type=f32)
               + bc_ref[...])
        cls_ref[0] = acc.astype(cls_ref.dtype)
    else:
        cat_ref[0, :, :c] = xn.astype(cat_ref.dtype)
        cat_ref[0, :, c:] = rn.astype(cat_ref.dtype)
        acc = (jnp.dot(xn, wx_ref[...], preferred_element_type=f32)
               + jnp.dot(rn, wr_ref[...], preferred_element_type=f32)
               + bc_ref[...])
        cls_ref[0] = acc.astype(cls_ref.dtype)

    # 2x2/2 max-pool on the f32 normalized values; single dense (R, w//2, 2C) store.
    def _pool_half(t):
        if R == 1:
            rm_buf[0] = jnp.maximum(t[:w, :], t[w:, :])             # (w, C)
        else:
            t3 = t.reshape(R, 2 * w, c)                             # image row pairs
            rm_buf[...] = jnp.maximum(t3[:, :w, :], t3[:, w:, :])   # (R, w, C)
        # TODO(synk): replace the scratch round-trip + stride-2 pl.ds compaction
        # with an in-vreg sublane-pair reduction once the (R,w,c)->(R,w//2,2,c)
        # reshape is confirmed to lower efficiently on all target generations.
        left = rm_buf[:, pl.ds(0, w // 2, 2), :]                    # even cols
        right = rm_buf[:, pl.ds(1, w // 2, 2), :]                   # odd cols
        return jnp.maximum(left, right)                             # (R, w//2, C)

    px = _pool_half(xn)
    pr = _pool_half(rn)
    pool_ref[0] = jnp.concatenate([px, pr], axis=-1).astype(pool_ref.dtype)


# --------------------------------------------------------------------------
# Forward wrapper
# --------------------------------------------------------------------------
def _forward(x, res, params, channel_major, out_dtype):
    bsz, n, c = x.shape
    h = w = int(round(n ** 0.5))
    assert h * w == n, "sequence length must be a perfect square"
    assert h % 2 == 0 and w % 2 == 0, "spatial dims must be even for the 2x2 pool"
    ncls = int(params["conv_w"].shape[1])

    in_dtype = x.dtype
    out_dtype = jnp.dtype(out_dtype) if out_dtype is not None else jnp.dtype(in_dtype)
    isz = jnp.dtype(in_dtype).itemsize
    osz = out_dtype.itemsize

    vmem_limit, budget = _vmem_limits()

    # ---- pass 1: BN batch statistics (parallel, N-tiled), combined in JAX.
    tn = _choose_stats_tile(n, c, isz, budget, bsz)
    ntiles = n // tn
    stat_out = jax.ShapeDtypeStruct((bsz, ntiles, 1, c), jnp.float32)
    stat_in = pl.BlockSpec((1, tn, c), lambda b, t: (b, t, 0))
    stat_os = pl.BlockSpec((1, 1, 1, c), lambda b, t: (b, t, 0, 0))
    mx, m2x, mr, m2r = pl.pallas_call(
        _stats_kernel,
        out_shape=(stat_out, stat_out, stat_out, stat_out),
        grid_spec=pltpu.PrefetchScalarGridSpec(
            num_scalar_prefetch=0,
            grid=(bsz, ntiles),
            in_specs=[stat_in, stat_in],
            out_specs=[stat_os, stat_os, stat_os, stat_os],
        ),
        compiler_params=pltpu.CompilerParams(
            dimension_semantics=("parallel", "parallel"),
            vmem_limit_bytes=vmem_limit),
    )(x, res)

    total = float(bsz * n)
    ax, bx = _fold_bn(mx, m2x, params["gamma_x"], params["beta_x"], float(tn), total, c)
    ar, br = _fold_bn(mr, m2r, params["gamma_r"], params["beta_r"], float(tn), total, c)

    # ---- conv weights in the orientation / dtype the kernel wants.
    w_dtype = jnp.bfloat16 if out_dtype == jnp.bfloat16 else jnp.float32
    if channel_major:
        wx = params["conv_w"][:c].T.astype(w_dtype)            # (ncls, C)
        wr = params["conv_w"][c:].T.astype(w_dtype)
        bc = params["conv_b"].reshape(ncls, 1).astype(jnp.float32)
        cat_shape, cls_shape = (bsz, 2 * c, n), (bsz, ncls, n)
        cat_spec = lambda rows: pl.BlockSpec((1, 2 * c, rows), lambda b, j: (b, 0, j))
        cls_spec = lambda rows: pl.BlockSpec((1, ncls, rows), lambda b, j: (b, 0, j))
        w_spec = pl.BlockSpec((ncls, c), lambda b, j: (0, 0))
        b_spec = pl.BlockSpec((ncls, 1), lambda b, j: (0, 0))
    else:
        wx = params["conv_w"][:c].astype(jnp.float32)          # (C, ncls)
        wr = params["conv_w"][c:].astype(jnp.float32)
        bc = params["conv_b"].reshape(1, ncls).astype(jnp.float32)
        cat_shape, cls_shape = (bsz, n, 2 * c), (bsz, n, ncls)
        cat_spec = lambda rows: pl.BlockSpec((1, rows, 2 * c), lambda b, j: (b, j, 0))
        cls_spec = lambda rows: pl.BlockSpec((1, rows, ncls), lambda b, j: (b, j, 0))
        w_spec = pl.BlockSpec((c, ncls), lambda b, j: (0, 0))
        b_spec = pl.BlockSpec((1, ncls), lambda b, j: (0, 0))

    R = _choose_rows_per_step(h, w, c, ncls, isz, osz, budget, channel_major, bsz)
    rows = 2 * R * w
    nsteps = (h // 2) // R

    kernel = functools.partial(_main_kernel, R, w, c, channel_major)
    row_spec = pl.BlockSpec((1, rows, c), lambda b, j: (b, j, 0))
    par_spec = pl.BlockSpec((1, c), lambda b, j: (0, 0))

    catted, cls, pooled = pl.pallas_call(
        kernel,
        out_shape=(
            jax.ShapeDtypeStruct(cat_shape, out_dtype),
            jax.ShapeDtypeStruct(cls_shape, out_dtype),
            jax.ShapeDtypeStruct((bsz, h // 2, w // 2, 2 * c), out_dtype),
        ),
        grid_spec=pltpu.PrefetchScalarGridSpec(
            num_scalar_prefetch=0,
            grid=(bsz, nsteps),
            in_specs=[row_spec, row_spec,
                      par_spec, par_spec, par_spec, par_spec,
                      w_spec, w_spec, b_spec],
            out_specs=[
                cat_spec(rows),
                cls_spec(rows),
                pl.BlockSpec((1, R, w // 2, 2 * c), lambda b, j: (b, j, 0, 0)),
            ],
            scratch_shapes=[pltpu.VMEM((R, w, c), jnp.float32)],
        ),
        compiler_params=pltpu.CompilerParams(
            dimension_semantics=("parallel", "parallel"),
            vmem_limit_bytes=vmem_limit),
    )(x, res, ax, bx, ar, br, wx, wr, bc)

    # ---- glue (free reshapes on the fast path)
    if channel_major:
        catted_nchw = catted.reshape(bsz, 2 * c, h, w)
        cur_cls_nchw = cls.reshape(bsz, ncls, h, w)
    else:
        catted_nchw = catted.reshape(bsz, h, w, 2 * c).transpose(0, 3, 1, 2)
        cur_cls_nchw = cls.reshape(bsz, h, w, ncls).transpose(0, 3, 1, 2)
    xres = pooled.reshape(bsz, (h // 2) * (w // 2), 2 * c)
    return catted_nchw, xres, cur_cls_nchw, None


def patch_residual_forward(x, res, params, *, out_dtype=None, channel_major=None):
    """PatchResidual.forward.  out_dtype defaults to the input dtype."""
    assert x.shape == res.shape, "x and res must have the same shape"
    _, n, _ = x.shape
    w = int(round(n ** 0.5))
    # Explicit, capability-gated layout choice (no silent exception fallback):
    # channel-major needs w % 8 == 0 so the in-kernel transpose / reshapes stay
    # tile-aligned; otherwise use channels-last outputs + a wrapper transpose.
    if channel_major is None:
        channel_major = (w % 8 == 0)
    elif channel_major and w % 8 != 0:
        channel_major = False
    return _forward(x, res, params, channel_major, out_dtype)


def patch_classifier_forward(x, res, idx, params_list, **kwargs):
    """PatchClassifier.forward: dispatch to the idx-th PatchResidual."""
    return patch_residual_forward(x, res, params_list[idx], **kwargs)


# --------------------------------------------------------------------------
# Self-test
# --------------------------------------------------------------------------
if __name__ == "__main__":
    B, DIM, HW, NCLS = 2, 8, 8, 10
    N = HW * HW

    key = jax.random.PRNGKey(0)
    ks = jax.random.split(key, 8)
    x = jax.random.normal(ks[0], (B, N, DIM), jnp.float32)
    res = jax.random.normal(ks[1], (B, N, DIM), jnp.float32)
    params = dict(
        gamma_x=1.0 + 0.1 * jax.random.normal(ks[2], (DIM,), jnp.float32),
        beta_x=0.1 * jax.random.normal(ks[3], (DIM,), jnp.float32),
        gamma_r=1.0 + 0.1 * jax.random.normal(ks[4], (DIM,), jnp.float32),
        beta_r=0.1 * jax.random.normal(ks[5], (DIM,), jnp.float32),
        # Conv2d(2*DIM -> NCLS, k=1) weight stored as matmul matrix (2C, ncls)
        conv_w=0.1 * jax.random.normal(ks[6], (2 * DIM, NCLS), jnp.float32),
        conv_b=0.1 * jax.random.normal(ks[7], (NCLS,), jnp.float32),
    )

    # pure-JAX reference (train-mode BatchNorm with biased variance)
    def _bn(t, g, bt):
        mean = jnp.mean(t, axis=(0, 1, 2))
        var = jnp.mean((t - mean) ** 2, axis=(0, 1, 2))
        return (t - mean) / jnp.sqrt(var + _EPS) * g + bt

    def _reference(xin, rin):
        x4 = xin.reshape(B, HW, HW, DIM)
        r4 = rin.reshape(B, HW, HW, DIM)
        cat = jnp.concatenate([_bn(x4, params["gamma_x"], params["beta_x"]),
                               _bn(r4, params["gamma_r"], params["beta_r"])], axis=-1)
        cls = jnp.einsum("bhwc,cn->bhwn", cat, params["conv_w"]) + params["conv_b"]
        pool = jnp.max(cat.reshape(B, HW // 2, 2, HW // 2, 2, 2 * DIM), axis=(2, 4))
        return cat, cls, pool

    # ---- f32 path: exact check against the reference.
    catted, xres, cur_cls, last = patch_residual_forward(x, res, params)
    jax.block_until_ready((catted, xres, cur_cls))

    cat_r, cls_r, pool_r = _reference(x, res)
    assert catted.shape == (B, 2 * DIM, HW, HW)
    assert cur_cls.shape == (B, NCLS, HW, HW)
    assert xres.shape == (B, (HW // 2) ** 2, 2 * DIM)
    assert jnp.allclose(catted, cat_r.transpose(0, 3, 1, 2), atol=2e-3, rtol=2e-3)
    assert jnp.allclose(cur_cls, cls_r.transpose(0, 3, 1, 2), atol=2e-3, rtol=2e-3)
    assert jnp.allclose(xres, pool_r.reshape(B, (HW // 2) ** 2, 2 * DIM),
                        atol=2e-3, rtol=2e-3)
    assert last is None

    # ---- bf16 path: native-dtype in / native-dtype out smoke check (loose tol).
    x16 = x.astype(jnp.bfloat16)
    r16 = res.astype(jnp.bfloat16)
    cat16, xres16, cls16, _ = patch_residual_forward(x16, r16, params)
    jax.block_until_ready((cat16, xres16, cls16))
    assert cat16.dtype == jnp.bfloat16 and xres16.dtype == jnp.bfloat16
    assert cls16.dtype == jnp.bfloat16
    cat_rb, cls_rb, pool_rb = _reference(x16.astype(jnp.float32),
                                         r16.astype(jnp.float32))
    assert jnp.allclose(cat16.astype(jnp.float32), cat_rb.transpose(0, 3, 1, 2),
                        atol=0.15, rtol=0.05)
    assert jnp.allclose(cls16.astype(jnp.float32), cls_rb.transpose(0, 3, 1, 2),
                        atol=0.15, rtol=0.05)
    assert jnp.allclose(xres16.astype(jnp.float32),
                        pool_rb.reshape(B, (HW // 2) ** 2, 2 * DIM),
                        atol=0.15, rtol=0.05)

    print("KERNEL_OK")
</pallas_src>

<mosaic_0001>
module attributes {stable_mosaic.version = 11 : i64} {
  func.func @_stats_kernel(%arg0: i32, %arg1: i32, %arg2: memref<1x64x8xf32, #tpu.memory_space<vmem>>, %arg3: memref<1x64x8xf32, #tpu.memory_space<vmem>>, %arg4: memref<1x1x1x8xf32, #tpu.memory_space<vmem>>, %arg5: memref<1x1x1x8xf32, #tpu.memory_space<vmem>>, %arg6: memref<1x1x1x8xf32, #tpu.memory_space<vmem>>, %arg7: memref<1x1x1x8xf32, #tpu.memory_space<vmem>>) attributes {dimension_semantics = [#tpu.dimension_semantics<parallel>, #tpu.dimension_semantics<parallel>], iteration_bounds = array<i64: 2, 1>, scalar_prefetch = 0 : i64, scratch_operands = 0 : i64, tpu.core_type = #tpu.core_type<tc>, window_params = [{transform_indices = @transform_0, window_bounds = array<i64: 1, 64, 8>}, {transform_indices = @transform_1, window_bounds = array<i64: 1, 64, 8>}, {transform_indices = @transform_2, window_bounds = array<i64: 1, 1, 1, 8>}, {transform_indices = @transform_3, window_bounds = array<i64: 1, 1, 1, 8>}, {transform_indices = @transform_4, window_bounds = array<i64: 1, 1, 1, 8>}, {transform_indices = @transform_5, window_bounds = array<i64: 1, 1, 1, 8>}]} {
    %c0 = arith.constant 0 : index
    %c0_0 = arith.constant 0 : index
    %c0_1 = arith.constant 0 : index
    %0 = vector.load %arg2[%c0, %c0_0, %c0_1] : memref<1x64x8xf32, #tpu.memory_space<vmem>>, vector<1x64x8xf32>
    %1 = vector.shape_cast %0 : vector<1x64x8xf32> to vector<64x8xf32>
    %c0_2 = arith.constant 0 : index
    %c0_3 = arith.constant 0 : index
    %c0_4 = arith.constant 0 : index
    %2 = vector.load %arg3[%c0_2, %c0_3, %c0_4] : memref<1x64x8xf32, #tpu.memory_space<vmem>>, vector<1x64x8xf32>
    %3 = vector.shape_cast %2 : vector<1x64x8xf32> to vector<64x8xf32>
    %cst = arith.constant dense<0.000000e+00> : vector<8xf32>
    %4 = vector.multi_reduction <add>, %1, %cst [0] : vector<64x8xf32> to vector<8xf32>
    %5 = vector.shape_cast %4 : vector<8xf32> to vector<1x8xf32>
    %cst_5 = arith.constant 1.562500e-02 : f32
    %6 = vector.broadcast %cst_5 : f32 to vector<1x8xf32>
    %7 = arith.mulf %5, %6 : vector<1x8xf32>
    %cst_6 = arith.constant dense<0.000000e+00> : vector<8xf32>
    %8 = vector.multi_reduction <add>, %3, %cst_6 [0] : vector<64x8xf32> to vector<8xf32>
    %9 = vector.shape_cast %8 : vector<8xf32> to vector<1x8xf32>
    %cst_7 = arith.constant 1.562500e-02 : f32
    %10 = vector.broadcast %cst_7 : f32 to vector<1x8xf32>
    %11 = arith.mulf %9, %10 : vector<1x8xf32>
    %12 = vector.broadcast %7 : vector<1x8xf32> to vector<64x8xf32>
    %13 = arith.subf %1, %12 : vector<64x8xf32>
    %14 = vector.broadcast %11 : vector<1x8xf32> to vector<64x8xf32>
    %15 = arith.subf %3, %14 : vector<64x8xf32>
    %c0_8 = arith.constant 0 : index
    %c0_9 = arith.constant 0 : index
    %c0_10 = arith.constant 0 : index
    %c0_11 = arith.constant 0 : index
    %16 = vector.load %arg4[%c0_8, %c0_9, %c0_10, %c0_11] : memref<1x1x1x8xf32, #tpu.memory_space<vmem>>, vector<1x1x1x8xf32>
    %17 = vector.shape_cast %16 : vector<1x1x1x8xf32> to vector<1x8xf32>
    %18 = vector.shape_cast %7 : vector<1x8xf32> to vector<1x1x1x8xf32>
    tpu.vector_store %arg4[%c0_8, %c0_9, %c0_10, %c0_11], %18 {strides = array<i32>} : memref<1x1x1x8xf32, #tpu.memory_space<vmem>>, vector<1x1x1x8xf32>,
    %19 = arith.mulf %13, %13 : vector<64x8xf32>
    %cst_12 = arith.constant dense<0.000000e+00> : vector<8xf32>
    %20 = vector.multi_reduction <add>, %19, %cst_12 [0] : vector<64x8xf32> to vector<8xf32>
    %21 = vector.shape_cast %20 : vector<8xf32> to vector<1x8xf32>
    %c0_13 = arith.constant 0 : index
    %c0_14 = arith.constant 0 : index
    %c0_15 = arith.constant 0 : index
    %c0_16 = arith.constant 0 : index
    %22 = vector.load %arg5[%c0_13, %c0_14, %c0_15, %c0_16] : memref<1x1x1x8xf32, #tpu.memory_space<vmem>>, vector<1x1x1x8xf32>
    %23 = vector.shape_cast %22 : vector<1x1x1x8xf32> to vector<1x8xf32>
    %24 = vector.shape_cast %21 : vector<1x8xf32> to vector<1x1x1x8xf32>
    tpu.vector_store %arg5[%c0_13, %c0_14, %c0_15, %c0_16], %24 {strides = array<i32>} : memref<1x1x1x8xf32, #tpu.memory_space<vmem>>, vector<1x1x1x8xf32>,
    %c0_17 = arith.constant 0 : index
    %c0_18 = arith.constant 0 : index
    %c0_19 = arith.constant 0 : index
    %c0_20 = arith.constant 0 : index
    %25 = vector.load %arg6[%c0_17, %c0_18, %c0_19, %c0_20] : memref<1x1x1x8xf32, #tpu.memory_space<vmem>>, vector<1x1x1x8xf32>
    %26 = vector.shape_cast %25 : vector<1x1x1x8xf32> to vector<1x8xf32>
    %27 = vector.shape_cast %11 : vector<1x8xf32> to vector<1x1x1x8xf32>
    tpu.vector_store %arg6[%c0_17, %c0_18, %c0_19, %c0_20], %27 {strides = array<i32>} : memref<1x1x1x8xf32, #tpu.memory_space<vmem>>, vector<1x1x1x8xf32>,
    %28 = arith.mulf %15, %15 : vector<64x8xf32>
    %cst_21 = arith.constant dense<0.000000e+00> : vector<8xf32>
    %29 = vector.multi_reduction <add>, %28, %cst_21 [0] : vector<64x8xf32> to vector<8xf32>
    %30 = vector.shape_cast %29 : vector<8xf32> to vector<1x8xf32>
    %c0_22 = arith.constant 0 : index
    %c0_23 = arith.constant 0 : index
    %c0_24 = arith.constant 0 : index
    %c0_25 = arith.constant 0 : index
    %31 = vector.load %arg7[%c0_22, %c0_23, %c0_24, %c0_25] : memref<1x1x1x8xf32, #tpu.memory_space<vmem>>, vector<1x1x1x8xf32>
    %32 = vector.shape_cast %31 : vector<1x1x1x8xf32> to vector<1x8xf32>
    %33 = vector.shape_cast %30 : vector<1x8xf32> to vector<1x1x1x8xf32>
    tpu.vector_store %arg7[%c0_22, %c0_23, %c0_24, %c0_25], %33 {strides = array<i32>} : memref<1x1x1x8xf32, #tpu.memory_space<vmem>>, vector<1x1x1x8xf32>,
    return
  }
  func.func @transform_0(%arg0: i32, %arg1: i32) -> (i32, i32, i32) {
    %c0_i32 = arith.constant 0 : i32
    %c0_i32_0 = arith.constant 0 : i32
    return %arg0, %arg1, %c0_i32 : i32, i32, i32
  }
  func.func @transform_1(%arg0: i32, %arg1: i32) -> (i32, i32, i32) {
    %c0_i32 = arith.constant 0 : i32
    %c0_i32_0 = arith.constant 0 : i32
    return %arg0, %arg1, %c0_i32 : i32, i32, i32
  }
  func.func @transform_2(%arg0: i32, %arg1: i32) -> (i32, i32, i32, i32) {
    %c0_i32 = arith.constant 0 : i32
    %c0_i32_0 = arith.constant 0 : i32
    %c0_i32_1 = arith.constant 0 : i32
    return %arg0, %arg1, %c0_i32, %c0_i32_0 : i32, i32, i32, i32
  }
  func.func @transform_3(%arg0: i32, %arg1: i32) -> (i32, i32, i32, i32) {
    %c0_i32 = arith.constant 0 : i32
    %c0_i32_0 = arith.constant 0 : i32
    %c0_i32_1 = arith.constant 0 : i32
    return %arg0, %arg1, %c0_i32, %c0_i32_0 : i32, i32, i32, i32
  }
  func.func @transform_4(%arg0: i32, %arg1: i32) -> (i32, i32, i32, i32) {
    %c0_i32 = arith.constant 0 : i32
    %c0_i32_0 = arith.constant 0 : i32
    %c0_i32_1 = arith.constant 0 : i32
    return %arg0, %arg1, %c0_i32, %c0_i32_0 : i32, i32, i32, i32
  }
  func.func @transform_5(%arg0: i32, %arg1: i32) -> (i32, i32, i32, i32) {
    %c0_i32 = arith.constant 0 : i32
    %c0_i32_0 = arith.constant 0 : i32
    %c0_i32_1 = arith.constant 0 : i32
    return %arg0, %arg1, %c0_i32, %c0_i32_0 : i32, i32, i32, i32
  }
}

</mosaic_0001>

<llo_original>
// kernel: tpu_custom_call.1
$region0: #{tpu_custom_call.1}
  #allocation0 [shape = 'u32[]', space=smem, size = 0x4, offset = 0x4, fixed_abs, tag = 'smem constant byte address 0x4 - core index']
  #allocation1 [shape = 'u32[144,128]{1,0:T(1,128)}', space=vmem, size = 0x12000, scoped, tag = 'internal scratch']
  %s0 = inlined_call_operand.hbm [shape: f32[2,64,8], index: 0, kind: input, shape index: {}]
  %s1 = inlined_call_operand.hbm [shape: f32[2,64,8], index: 1, kind: input, shape index: {}]
  %s2 = inlined_call_operand.hbm [shape: f32[2,1,1,8], index: 2, kind: output, shape index: {0}]
  %s3 = inlined_call_operand.hbm [shape: f32[2,1,1,8], index: 3, kind: output, shape index: {1}]
  %s4 = inlined_call_operand.hbm [shape: f32[2,1,1,8], index: 4, kind: output, shape index: {2}]
  %s5 = inlined_call_operand.hbm [shape: f32[2,1,1,8], index: 5, kind: output, shape index: {3}]
  %6 = xla_tuple %s2, %s3, %s4, %s5
  %s7 = sld [smem:[#allocation0]]
  $region73: #{tpu_custom_call.1} parent=0
    _
  %s9 = ssub.s32 1, %s7
  %s10 = scalar_select 0, %s9, %s7
  $region1: #{tpu_custom_call.1} parent=0
    #allocation2 [shape = 'u8[65536]{0}', space=vmem, size = 0x10000, scoped, tag = 'input window, operand 0']
    #allocation3 [shape = 's32[2]{0}', space=sflag, size = 0x8, scoped, tag = 'scoped memory for tpu_custom_call.1']
    #allocation4 [shape = 's32[2]{0}', space=sflag, size = 0x8, scoped, tag = 'scoped memory for tpu_custom_call.1']
    #allocation5 [shape = 'u8[65536]{0}', space=vmem, size = 0x10000, scoped, tag = 'input window, operand 1']
    #allocation6 [shape = 's32[2]{0}', space=sflag, size = 0x8, scoped, tag = 'scoped memory for tpu_custom_call.1']
    #allocation7 [shape = 'u8[1024]{0}', space=vmem, size = 0x400, scoped, tag = 'output window, operand 0']
    #allocation8 [shape = 'u8[1024]{0}', space=vmem, size = 0x400, scoped, tag = 'output window, operand 1']
    #allocation9 [shape = 's32[2]{0}', space=sflag, size = 0x8, scoped, tag = 'scoped memory for tpu_custom_call.1']
    #allocation10 [shape = 'u8[1024]{0}', space=vmem, size = 0x400, scoped, tag = 'output window, operand 2']
    #allocation11 [shape = 'u8[1024]{0}', space=vmem, size = 0x400, scoped, tag = 'output window, operand 3']
    #allocation12 [shape = 's32[2]{0}', space=sflag, size = 0x8, scoped, tag = 'scoped memory for tpu_custom_call.1']
    %11 = vsyncpa [#allocation3], 0
    %s12 = scalar_lea.sflag [#allocation3], 1
    %13 = vsyncpa %s12, 0
    %14 = vsyncpa [#allocation6], 0
    %s15 = scalar_lea.sflag [#allocation6], 1
    %16 = vsyncpa %s15, 0
    %17 = vsyncpa [#allocation4], 0
    %s18 = scalar_lea.sflag [#allocation4], 1
    %19 = vsyncpa %s18, 0
    %20 = vsyncpa [#allocation9], 0
    %s21 = scalar_lea.sflag [#allocation9], 1
    %22 = vsyncpa %s21, 0
    %23 = vsyncpa [#allocation12], 0
    %s24 = scalar_lea.sflag [#allocation12], 1
    %25 = vsyncpa %s24, 0
    loop: start=0, step=1, limit=4
    $region2: #{tpu_custom_call.1} parent=1 // loop_pre_header
      _
    $region3: #{tpu_custom_call.1} parent=1 // loop_header
      %s27 = sphi 0, %s31
      %p28 = scmp.ge.s32.totalorder %s27, 4
      %s34 = sphi 0, %s46
      %s35 = sphi 0, %s42
      %s36 = sphi 0, %s34
      %s37 = sphi 0, %s35
      %s38 = sphi 0, %s36
      %s39 = sphi 0, %s37
      %s51 = sphi 0, %s53
      %s54 = sphi 0, %s51
      %s55 = sphi 0, %s54
      %s71 = sphi 0, %s55
      %s79 = sphi 0, %s81
      %s82 = sphi 0, %s79
      %s83 = sphi 0, %s82
      %s99 = sphi 0, %s83
      %s107 = sphi 0, %s109
      %s110 = sphi 0, %s107
      %s111 = sphi 0, %s110
      %s127 = sphi 0, %s111
      %s135 = sphi 0, %s137
      %s138 = sphi 0, %s135
      %s139 = sphi 0, %s138
      %s155 = sphi 0, %s139
      %s163 = sphi 0, %s165
      %s166 = sphi 0, %s163
      %s167 = sphi 0, %s166
      %s183 = sphi 0, %s167
      %s191 = sphi 0, %s193
      %s194 = sphi 0, %s191
      %s195 = sphi 0, %s194
      %s211 = sphi 0, %s195
    $region4: #{tpu_custom_call.1} parent=1 // loop_header_branch
      %30 = sbr.rel (%p28) target = $region8
    $region5: #{tpu_custom_call.1} parent=1 // loop_body
      %s32 = ssub.s32 %s27, 1
      %s33 = ssub.s32 %s27, 2
      %s40 = sadd.s32 1, %s35
      %p41 = scmp.ge.s32.totalorder %s40, 1
      %s42 = scalar_select %p41, 0, %s40
      %s43 = sadd.s32 1, %s34
      %s44 = scalar_select %p41, %s43, %s34
      %p45 = scmp.ge.s32.totalorder %s44, 2
      %s46 = scalar_select %p45, 0, %s44
      %s47 = ssub.s32 %s34, %s46
      %s48 = ssub.s32 %s35, %s42
      %s49 = sor.u32 %s47, %s48
      %p50 = scmp.eq.s32.totalorder %s49, 0
      %s52 = sadd.s32 %s51, 1
      %s53 = scalar_select %p50, %s51, %s52
      %p56 = pneg %p50
      %p57 = scmp.eq.s32.totalorder %s27, 1
      %p58 = por %p56, %p57
      %p59 = scmp.ne.s32.totalorder %s51, %s54
      %p60 = scmp.eq.s32.totalorder %s27, 0
      %p61 = por %p59, %p60
      %p62 = scmp.ne.s32.totalorder %s51, %s54
      %p63 = scmp.eq.s32.totalorder %s32, 1
      %p64 = por %p62, %p63
      %p65 = scmp.ne.s32.totalorder %s54, %s55
      %p66 = scmp.eq.s32.totalorder %s32, 0
      %p67 = por %p65, %p66
      %p68 = scmp.ne.s32.totalorder %s54, %s55
      %p69 = scmp.eq.s32.totalorder %s33, 1
      %p70 = por %p68, %p69
      %p72 = scmp.ne.s32.totalorder %s55, %s71
      %p73 = scmp.eq.s32.totalorder %s33, 0
      %p74 = por %p72, %p73
      %s75 = ssub.s32 %s34, %s46
      %s76 = ssub.s32 %s35, %s42
      %s77 = sor.u32 %s75, %s76
      %p78 = scmp.eq.s32.totalorder %s77, 0
      %s80 = sadd.s32 %s79, 1
      %s81 = scalar_select %p78, %s79, %s80
      %p84 = pneg %p78
      %p85 = scmp.eq.s32.totalorder %s27, 1
      %p86 = por %p84, %p85
      %p87 = scmp.ne.s32.totalorder %s79, %s82
      %p88 = scmp.eq.s32.totalorder %s27, 0
      %p89 = por %p87, %p88
      %p90 = scmp.ne.s32.totalorder %s79, %s82
      %p91 = scmp.eq.s32.totalorder %s32, 1
      %p92 = por %p90, %p91
      %p93 = scmp.ne.s32.totalorder %s82, %s83
      %p94 = scmp.eq.s32.totalorder %s32, 0
      %p95 = por %p93, %p94
      %p96 = scmp.ne.s32.totalorder %s82, %s83
      %p97 = scmp.eq.s32.totalorder %s33, 1
      %p98 = por %p96, %p97
      %p100 = scmp.ne.s32.totalorder %s83, %s99
      %p101 = scmp.eq.s32.totalorder %s33, 0
      %p102 = por %p100, %p101
      %s103 = ssub.s32 %s34, %s46
      %s104 = ssub.s32 %s35, %s42
      %s105 = sor.u32 %s103, %s104
      %p106 = scmp.eq.s32.totalorder %s105, 0
      %s108 = sadd.s32 %s107, 1
      %s109 = scalar_select %p106, %s107, %s108
      %p112 = pneg %p106
      %p113 = scmp.eq.s32.totalorder %s27, 1
      %p114 = por %p112, %p113
      %p115 = scmp.ne.s32.totalorder %s107, %s110
      %p116 = scmp.eq.s32.totalorder %s27, 0
      %p117 = por %p115, %p116
      %p118 = scmp.ne.s32.totalorder %s107, %s110
      %p119 = scmp.eq.s32.totalorder %s32, 1
      %p120 = por %p118, %p119
      %p121 = scmp.ne.s32.totalorder %s110, %s111
      %p122 = scmp.eq.s32.totalorder %s32, 0
      %p123 = por %p121, %p122
      %p124 = scmp.ne.s32.totalorder %s110, %s111
      %p125 = scmp.eq.s32.totalorder %s33, 1
      %p126 = por %p124, %p125
      %p128 = scmp.ne.s32.totalorder %s111, %s127
      %p129 = scmp.eq.s32.totalorder %s33, 0
      %p130 = por %p128, %p129
      %s131 = ssub.s32 %s34, %s46
      %s132 = ssub.s32 %s35, %s42
      %s133 = sor.u32 %s131, %s132
      %p134 = scmp.eq.s32.totalorder %s133, 0
      %s136 = sadd.s32 %s135, 1
      %s137 = scalar_select %p134, %s135, %s136
      %p140 = pneg %p134
      %p141 = scmp.eq.s32.totalorder %s27, 1
      %p142 = por %p140, %p141
      %p143 = scmp.ne.s32.totalorder %s135, %s138
      %p144 = scmp.eq.s32.totalorder %s27, 0
      %p145 = por %p143, %p144
      %p146 = scmp.ne.s32.totalorder %s135, %s138
      %p147 = scmp.eq.s32.totalorder %s32, 1
      %p148 = por %p146, %p147
      %p149 = scmp.ne.s32.totalorder %s138, %s139
      %p150 = scmp.eq.s32.totalorder %s32, 0
      %p151 = por %p149, %p150
      %p152 = scmp.ne.s32.totalorder %s138, %s139
      %p153 = scmp.eq.s32.totalorder %s33, 1
      %p154 = por %p152, %p153
      %p156 = scmp.ne.s32.totalorder %s139, %s155
      %p157 = scmp.eq.s32.totalorder %s33, 0
      %p158 = por %p156, %p157
      %s159 = ssub.s32 %s34, %s46
      %s160 = ssub.s32 %s35, %s42
      %s161 = sor.u32 %s159, %s160
      %p162 = scmp.eq.s32.totalorder %s161, 0
      %s164 = sadd.s32 %s163, 1
      %s165 = scalar_select %p162, %s163, %s164
      %p168 = pneg %p162
      %p169 = scmp.eq.s32.totalorder %s27, 1
      %p170 = por %p168, %p169
      %p171 = scmp.ne.s32.totalorder %s163, %s166
      %p172 = scmp.eq.s32.totalorder %s27, 0
      %p173 = por %p171, %p172
      %p174 = scmp.ne.s32.totalorder %s163, %s166
      %p175 = scmp.eq.s32.totalorder %s32, 1
      %p176 = por %p174, %p175
      %p177 = scmp.ne.s32.totalorder %s166, %s167
      %p178 = scmp.eq.s32.totalorder %s32, 0
      %p179 = por %p177, %p178
      %p180 = scmp.ne.s32.totalorder %s166, %s167
      %p181 = scmp.eq.s32.totalorder %s33, 1
      %p182 = por %p180, %p181
      %p184 = scmp.ne.s32.totalorder %s167, %s183
      %p185 = scmp.eq.s32.totalorder %s33, 0
      %p186 = por %p184, %p185
      %s187 = ssub.s32 %s34, %s46
      %s188 = ssub.s32 %s35, %s42
      %s189 = sor.u32 %s187, %s188
      %p190 = scmp.eq.s32.totalorder %s189, 0
      %s192 = sadd.s32 %s191, 1
      %s193 = scalar_select %p190, %s191, %s192
      %p196 = pneg %p190
      %p197 = scmp.eq.s32.totalorder %s27, 1
      %p198 = por %p196, %p197
      %p199 = scmp.ne.s32.totalorder %s191, %s194
      %p200 = scmp.eq.s32.totalorder %s27, 0
      %p201 = por %p199, %p200
      %p202 = scmp.ne.s32.totalorder %s191, %s194
      %p203 = scmp.eq.s32.totalorder %s32, 1
      %p204 = por %p202, %p203
      %p205 = scmp.ne.s32.totalorder %s194, %s195
      %p206 = scmp.eq.s32.totalorder %s32, 0
      %p207 = por %p205, %p206
      %p208 = scmp.ne.s32.totalorder %s194, %s195
      %p209 = scmp.eq.s32.totalorder %s33, 1
      %p210 = por %p208, %p209
      %p212 = scmp.ne.s32.totalorder %s195, %s211
      %p213 = scmp.eq.s32.totalorder %s33, 0
      %p214 = por %p212, %p213
      %p215 = scmp.le.s32.totalorder 1, %s27
      %p216 = scmp.lt.s32.totalorder %s27, 3
      %p217 = pnand %p215, %p216
      %p218 = pneg %p217
      // Predicated region
      $region9: #{tpu_custom_call.1} parent=5 // pred_check
        _
      $region10: #{tpu_custom_call.1} parent=5 // pred_check_branch
        %220 = sbr.rel (%p217) target = $region12
      $region11: #{tpu_custom_call.1} parent=5 // pred_region
        %s221 = ssub.s32 %s27, 1
      $region12: #{tpu_custom_call.1} parent=5 // pred_fallthru
        _
      %p222 = scmp.lt.s32.totalorder %s27, 2
      // Predicated region
      $region13: #{tpu_custom_call.1} parent=5 // pred_check
        %p223 = pneg %p222
      $region14: #{tpu_custom_call.1} parent=5 // pred_check_branch
        %225 = sbr.rel (%p223) target = $region16
      $region15: #{tpu_custom_call.1} parent=5 // pred_region
        // Predicated region
        $region17: #{tpu_custom_call.1} parent=15 // pred_check
          %p226 = pneg %p61
        $region18: #{tpu_custom_call.1} parent=15 // pred_check_branch
          %228 = sbr.rel (%p226) target = $region20
        $region19: #{tpu_custom_call.1} parent=15 // pred_region
          %s229 = sand.u32 %s51, 1
          %s230 = scalar_lea.sflag [#allocation3], %s229
          %s231 = sand.u32 %s51, 1
          %s232 = smul.addr %s231, 64
          %s233 = scalar_lea.vmem [#allocation2], %s232
          %s234 = smul.u32 8, %s35
          %s236 = ssub.s32 1024, 1024
          %237 = vsyncadd %s230, %s236
          %s238 = smul.addr %s34, 8
          %s239 = sadd.s32 %s234, %s238
          %s240 = smul.addr %s239, 128
          %s241 = scalar_lea.hbm %s0, %s240
          %s242 = sshll.u32 %s233, 4
          %s243 = int_to_ptr.vmem [resolvable:$true] %s242
          %248 = dma.hbm_to_vmem [thread:$0]  %s241, 1024, %s243, %s230, 128, 128, 8
        $region20: #{tpu_custom_call.1} parent=15 // pred_fallthru
          _
        // Predicated region
        $region21: #{tpu_custom_call.1} parent=15 // pred_check
          %p249 = pneg %p89
        $region22: #{tpu_custom_call.1} parent=15 // pred_check_branch
          %251 = sbr.rel (%p249) target = $region24
        $region23: #{tpu_custom_call.1} parent=15 // pred_region
          %s252 = sand.u32 %s79, 1
          %s253 = scalar_lea.sflag [#allocation6], %s252
          %s254 = sand.u32 %s79, 1
          %s255 = smul.addr %s254, 64
          %s256 = scalar_lea.vmem [#allocation5], %s255
          %s257 = smul.u32 8, %s35
          %s259 = ssub.s32 1024, 1024
          %260 = vsyncadd %s253, %s259
          %s261 = smul.addr %s34, 8
          %s262 = sadd.s32 %s257, %s261
          %s263 = smul.addr %s262, 128
          %s264 = scalar_lea.hbm %s1, %s263
          %s265 = sshll.u32 %s256, 4
          %s266 = int_to_ptr.vmem [resolvable:$true] %s265
          %271 = dma.hbm_to_vmem [thread:$0]  %s264, 1024, %s266, %s253, 128, 128, 8
        $region24: #{tpu_custom_call.1} parent=15 // pred_fallthru
          _
      $region16: #{tpu_custom_call.1} parent=5 // pred_fallthru
        _
      %p272 = scmp.le.s32.totalorder 1, %s27
      %p273 = scmp.lt.s32.totalorder %s27, 3
      %p274 = pnand %p272, %p273
      %p275 = pneg %p274
      // Predicated region
      $region25: #{tpu_custom_call.1} parent=5 // pred_check
        _
      $region26: #{tpu_custom_call.1} parent=5 // pred_check_branch
        %277 = sbr.rel (%p274) target = $region28
      $region27: #{tpu_custom_call.1} parent=5 // pred_region
        %s278 = ssub.s32 %s27, 1
        %s279 = sand.u32 %s54, 1
        %s280 = scalar_lea.sflag [#allocation3], %s279
        %s281 = sand.u32 %s54, 1
        %s282 = smul.addr %s281, 64
        %s283 = scalar_lea.vmem [#allocation2], %s282
        // Predicated region
        $region29: #{tpu_custom_call.1} parent=27 // pred_check
          %p284 = pneg %p67
        $region30: #{tpu_custom_call.1} parent=27 // pred_check_branch
          %286 = sbr.rel (%p284) target = $region32
        $region31: #{tpu_custom_call.1} parent=27 // pred_region
          %287 = dma.done %s280, 1024
        $region32: #{tpu_custom_call.1} parent=27 // pred_fallthru
          _
        %s288 = sand.u32 %s82, 1
        %s289 = scalar_lea.sflag [#allocation6], %s288
        %s290 = sand.u32 %s82, 1
        %s291 = smul.addr %s290, 64
        %s292 = scalar_lea.vmem [#allocation5], %s291
        // Predicated region
        $region33: #{tpu_custom_call.1} parent=27 // pred_check
          %p293 = pneg %p95
        $region34: #{tpu_custom_call.1} parent=27 // pred_check_branch
          %295 = sbr.rel (%p293) target = $region36
        $region35: #{tpu_custom_call.1} parent=27 // pred_region
          %296 = dma.done %s289, 1024
        $region36: #{tpu_custom_call.1} parent=27 // pred_fallthru
          _
        %s297 = sand.u32 %s54, 1
        %s298 = scalar_lea.sflag [#allocation3], %s297
        %s299 = sand.u32 %s54, 1
        %s300 = smul.addr %s299, 64
        %s301 = scalar_lea.vmem [#allocation2], %s300
        %p302 = pneg %p67
        %p303 = pneg %p64
        %s304 = sand.u32 %s82, 1
        %s305 = scalar_lea.sflag [#allocation6], %s304
        %s306 = sand.u32 %s82, 1
        %s307 = smul.addr %s306, 64
        %s308 = scalar_lea.vmem [#allocation5], %s307
        %p309 = pneg %p95
        %p310 = pneg %p92
        %p311 = pneg %p123
        %p312 = pneg %p120
        %s313 = sand.u32 %s110, 1
        %s314 = scalar_lea.sflag [#allocation4], %s313
        %s315 = sand.u32 %s110, 1
        %s316 = scalar_lea.vmem [#allocation7], %s315
        %p317 = pneg %p151
        %p318 = pneg %p148
        %s319 = sand.u32 %s32, 1
        %s320 = scalar_lea.sflag [#allocation9], %s319
        %s321 = sand.u32 %s138, 1
        %s322 = scalar_lea.vmem [#allocation8], %s321
        %p323 = pneg %p179
        %p324 = pneg %p176
        %s325 = sand.u32 %s32, 1
        %s326 = scalar_lea.sflag [#allocation9], %s325
        %s327 = sand.u32 %s166, 1
        %s328 = scalar_lea.vmem [#allocation10], %s327
        %p329 = pneg %p207
        %p330 = pneg %p204
        %s331 = sand.u32 %s194, 1
        %s332 = scalar_lea.sflag [#allocation12], %s331
        %s333 = sand.u32 %s194, 1
        %s334 = scalar_lea.vmem [#allocation11], %s333
        %s335 = smul.u32 8, %s37
        %s336 = smul.u32 8, %s37
        %v337 = vld [vmem:[%s283] sm:$0xff]
        %v338 = vld [vmem:[%s283 + $0x8] sm:$0xff]
        %v339 = vld [vmem:[%s283 + $0x10] sm:$0xff]
        %v340 = vld [vmem:[%s283 + $0x18] sm:$0xff]
        %v341 = vld [vmem:[%s283 + $0x20] sm:$0xff]
        %v342 = vld [vmem:[%s283 + $0x28] sm:$0xff]
        %v343 = vld [vmem:[%s283 + $0x30] sm:$0xff]
        %v344 = vld [vmem:[%s283 + $0x38] sm:$0xff]
        %v345 = vld [vmem:[%s292] sm:$0xff]
        %v346 = vld [vmem:[%s292 + $0x8] sm:$0xff]
        %v347 = vld [vmem:[%s292 + $0x10] sm:$0xff]
        %v348 = vld [vmem:[%s292 + $0x18] sm:$0xff]
        %v349 = vld [vmem:[%s292 + $0x20] sm:$0xff]
        %v350 = vld [vmem:[%s292 + $0x28] sm:$0xff]
        %v351 = vld [vmem:[%s292 + $0x30] sm:$0xff]
        %v352 = vld [vmem:[%s292 + $0x38] sm:$0xff]
        %vm353 = vcmask 64512
        %v354 = vsel %vm353, %v337, 0.0
        %v355 = vsel %vm353, %v338, 0.0
        %v356 = vadd.f32 %v354, %v355
        %v357 = vsel %vm353, %v339, 0.0
        %v358 = vadd.f32 %v356, %v357
        %v359 = vsel %vm353, %v340, 0.0
        %v360 = vadd.f32 %v358, %v359
        %v361 = vsel %vm353, %v341, 0.0
        %v362 = vadd.f32 %v360, %v361
        %v363 = vsel %vm353, %v342, 0.0
        %v364 = vadd.f32 %v362, %v363
        %v365 = vsel %vm353, %v343, 0.0
        %v366 = vadd.f32 %v364, %v365
        %v367 = vsel %vm353, %v344, 0.0
        %v368 = vadd.f32 %v366, %v367
        %v369 = vrot.slane %v368, 4
        %v370 = vadd.f32 %v368, %v369
        %v371 = vrot.slane %v370, 2
        %v372 = vadd.f32 %v370, %v371
        %v373 = vrot.slane %v372, 1
        %v374 = vadd.f32 %v372, %v373
        %v375 = vmul.f32 %v374, 0.015625
        %v376 = vsel %vm353, %v345, 0.0
        %v377 = vsel %vm353, %v346, 0.0
        %v378 = vadd.f32 %v376, %v377
        %v379 = vsel %vm353, %v347, 0.0
        %v380 = vadd.f32 %v378, %v379
        %v381 = vsel %vm353, %v348, 0.0
        %v382 = vadd.f32 %v380, %v381
        %v383 = vsel %vm353, %v349, 0.0
        %v384 = vadd.f32 %v382, %v383
        %v385 = vsel %vm353, %v350, 0.0
        %v386 = vadd.f32 %v384, %v385
        %v387 = vsel %vm353, %v351, 0.0
        %v388 = vadd.f32 %v386, %v387
        %v389 = vsel %vm353, %v352, 0.0
        %v390 = vadd.f32 %v388, %v389
        %v391 = vrot.slane %v390, 4
        %v392 = vadd.f32 %v390, %v391
        %v393 = vrot.slane %v392, 2
        %v394 = vadd.f32 %v392, %v393
        %v395 = vrot.slane %v394, 1
        %v396 = vadd.f32 %v394, %v395
        %v397 = vmul.f32 %v396, 0.015625
        %v398 = vsub.f32 %v337, %v375
        %v399 = vsub.f32 %v338, %v375
        %v400 = vsub.f32 %v339, %v375
        %v401 = vsub.f32 %v340, %v375
        %v402 = vsub.f32 %v341, %v375
        %v403 = vsub.f32 %v342, %v375
        %v404 = vsub.f32 %v343, %v375
        %v405 = vsub.f32 %v344, %v375
        %v406 = vsub.f32 %v345, %v397
        %v407 = vsub.f32 %v346, %v397
        %v408 = vsub.f32 %v347, %v397
        %v409 = vsub.f32 %v348, %v397
        %v410 = vsub.f32 %v349, %v397
        %v411 = vsub.f32 %v350, %v397
        %v412 = vsub.f32 %v351, %v397
        %v413 = vsub.f32 %v352, %v397
        %vm414 = vcmask 57344
        %415 = vst.msk [vmem:[%s316] sm:$0x1] %vm414, %v375
        %v416 = vmul.f32 %v398, %v398
        %v417 = vmul.f32 %v399, %v399
        %v418 = vmul.f32 %v400, %v400
        %v419 = vmul.f32 %v401, %v401
        %v420 = vmul.f32 %v402, %v402
        %v421 = vmul.f32 %v403, %v403
        %v422 = vmul.f32 %v404, %v404
        %v423 = vmul.f32 %v405, %v405
        %v424 = vsel %vm353, %v416, 0.0
        %v425 = vsel %vm353, %v417, 0.0
        %v426 = vadd.f32 %v424, %v425
        %v427 = vsel %vm353, %v418, 0.0
        %v428 = vadd.f32 %v426, %v427
        %v429 = vsel %vm353, %v419, 0.0
        %v430 = vadd.f32 %v428, %v429
        %v431 = vsel %vm353, %v420, 0.0
        %v432 = vadd.f32 %v430, %v431
        %v433 = vsel %vm353, %v421, 0.0
        %v434 = vadd.f32 %v432, %v433
        %v435 = vsel %vm353, %v422, 0.0
        %v436 = vadd.f32 %v434, %v435
        %v437 = vsel %vm353, %v423, 0.0
        %v438 = vadd.f32 %v436, %v437
        %v439 = vrot.slane %v438, 4
        %v440 = vadd.f32 %v438, %v439
        %v441 = vrot.slane %v440, 2
        %v442 = vadd.f32 %v440, %v441
        %v443 = vrot.slane %v442, 1
        %v444 = vadd.f32 %v442, %v443
        %445 = vst.msk [vmem:[%s322] sm:$0x1] %vm414, %v444
        %446 = vst.msk [vmem:[%s328] sm:$0x1] %vm414, %v397
        %v447 = vmul.f32 %v406, %v406
        %v448 = vmul.f32 %v407, %v407
        %v449 = vmul.f32 %v408, %v408
        %v450 = vmul.f32 %v409, %v409
        %v451 = vmul.f32 %v410, %v410
        %v452 = vmul.f32 %v411, %v411
        %v453 = vmul.f32 %v412, %v412
        %v454 = vmul.f32 %v413, %v413
        %v455 = vsel %vm353, %v447, 0.0
        %v456 = vsel %vm353, %v448, 0.0
        %v457 = vadd.f32 %v455, %v456
        %v458 = vsel %vm353, %v449, 0.0
        %v459 = vadd.f32 %v457, %v458
        %v460 = vsel %vm353, %v450, 0.0
        %v461 = vadd.f32 %v459, %v460
        %v462 = vsel %vm353, %v451, 0.0
        %v463 = vadd.f32 %v461, %v462
        %v464 = vsel %vm353, %v452, 0.0
        %v465 = vadd.f32 %v463, %v464
        %v466 = vsel %vm353, %v453, 0.0
        %v467 = vadd.f32 %v465, %v466
        %v468 = vsel %vm353, %v454, 0.0
        %v469 = vadd.f32 %v467, %v468
        %v470 = vrot.slane %v469, 4
        %v471 = vadd.f32 %v469, %v470
        %v472 = vrot.slane %v471, 2
        %v473 = vadd.f32 %v471, %v472
        %v474 = vrot.slane %v473, 1
        %v475 = vadd.f32 %v473, %v474
        %476 = vst.msk [vmem:[%s334] sm:$0x1] %vm414, %v475
        %s477 = sand.u32 %s110, 1
        %s478 = scalar_lea.sflag [#allocation4], %s477
        %s479 = sand.u32 %s110, 1
        %s480 = scalar_lea.vmem [#allocation7], %s479
        %s481 = sand.u32 %s32, 1
        %s482 = scalar_lea.sflag [#allocation9], %s481
        %s483 = sand.u32 %s138, 1
        %s484 = scalar_lea.vmem [#allocation8], %s483
        %s485 = sand.u32 %s32, 1
        %s486 = scalar_lea.sflag [#allocation9], %s485
        %s487 = sand.u32 %s166, 1
        %s488 = scalar_lea.vmem [#allocation10], %s487
        %s489 = sand.u32 %s194, 1
        %s490 = scalar_lea.sflag [#allocation12], %s489
        %s491 = sand.u32 %s194, 1
        %s492 = scalar_lea.vmem [#allocation11], %s491
        // Predicated region
        $region37: #{tpu_custom_call.1} parent=27 // pred_check
          %p493 = pneg %p120
        $region38: #{tpu_custom_call.1} parent=27 // pred_check_branch
          %495 = sbr.rel (%p493) target = $region40
        $region39: #{tpu_custom_call.1} parent=27 // pred_region
          %s497 = ssub.s32 16, 16
          %498 = vsyncadd %s478, %s497
          %s499 = sadd.s32 %s37, %s36
          %s500 = smul.addr %s499, 16
          %s501 = scalar_lea.hbm %s2, %s500
          %s503 = sshll.u32 %s480, 4
          %s504 = int_to_ptr.vmem [resolvable:$true] %s503
          %506 = dma.vmem_to_hbm [thread:$0]  %s504, 16, %s501, %s478
        $region40: #{tpu_custom_call.1} parent=27 // pred_fallthru
          _
        // Predicated region
        $region41: #{tpu_custom_call.1} parent=27 // pred_check
          %p507 = pneg %p148
        $region42: #{tpu_custom_call.1} parent=27 // pred_check_branch
          %509 = sbr.rel (%p507) target = $region44
        $region43: #{tpu_custom_call.1} parent=27 // pred_region
          %s511 = ssub.s32 16, 16
          %512 = vsyncadd %s482, %s511
          %s513 = sadd.s32 %s37, %s36
          %s514 = smul.addr %s513, 16
          %s515 = scalar_lea.hbm %s3, %s514
          %s517 = sshll.u32 %s484, 4
          %s518 = int_to_ptr.vmem [resolvable:$true] %s517
          %520 = dma.vmem_to_hbm [thread:$0]  %s518, 16, %s515, %s482
        $region44: #{tpu_custom_call.1} parent=27 // pred_fallthru
          _
        // Predicated region
        $region45: #{tpu_custom_call.1} parent=27 // pred_check
          %p521 = pneg %p176
        $region46: #{tpu_custom_call.1} parent=27 // pred_check_branch
          %523 = sbr.rel (%p521) target = $region48
        $region47: #{tpu_custom_call.1} parent=27 // pred_region
          %s525 = ssub.s32 16, 16
          %526 = vsyncadd %s486, %s525
          %s527 = sadd.s32 %s37, %s36
          %s528 = smul.addr %s527, 16
          %s529 = scalar_lea.hbm %s4, %s528
          %s531 = sshll.u32 %s488, 4
          %s532 = int_to_ptr.vmem [resolvable:$true] %s531
          %534 = dma.vmem_to_hbm [thread:$0]  %s532, 16, %s529, %s486
        $region48: #{tpu_custom_call.1} parent=27 // pred_fallthru
          _
        // Predicated region
        $region49: #{tpu_custom_call.1} parent=27 // pred_check
          %p535 = pneg %p204
        $region50: #{tpu_custom_call.1} parent=27 // pred_check_branch
          %537 = sbr.rel (%p535) target = $region52
        $region51: #{tpu_custom_call.1} parent=27 // pred_region
          %s539 = ssub.s32 16, 16
          %540 = vsyncadd %s490, %s539
          %s541 = sadd.s32 %s37, %s36
          %s542 = smul.addr %s541, 16
          %s543 = scalar_lea.hbm %s5, %s542
          %s545 = sshll.u32 %s492, 4
          %s546 = int_to_ptr.vmem [resolvable:$true] %s545
          %548 = dma.vmem_to_hbm [thread:$0]  %s546, 16, %s543, %s490
        $region52: #{tpu_custom_call.1} parent=27 // pred_fallthru
          _
      $region28: #{tpu_custom_call.1} parent=5 // pred_fallthru
        _
      %p549 = scmp.le.s32.totalorder 2, %s27
      // Predicated region
      $region53: #{tpu_custom_call.1} parent=5 // pred_check
        %p550 = pneg %p549
      $region54: #{tpu_custom_call.1} parent=5 // pred_check_branch
        %552 = sbr.rel (%p550) target = $region56
      $region55: #{tpu_custom_call.1} parent=5 // pred_region
        %s553 = ssub.s32 %s27, 2
        // Predicated region
        $region57: #{tpu_custom_call.1} parent=55 // pred_check
          %p554 = pneg %p126
        $region58: #{tpu_custom_call.1} parent=55 // pred_check_branch
          %556 = sbr.rel (%p554) target = $region60
        $region59: #{tpu_custom_call.1} parent=55 // pred_region
          %s557 = sand.u32 %s111, 1
          %s558 = scalar_lea.sflag [#allocation4], %s557
          %s559 = sand.u32 %s111, 1
          %s560 = scalar_lea.vmem [#allocation7], %s559
          %561 = dma.done %s558, 16
        $region60: #{tpu_custom_call.1} parent=55 // pred_fallthru
          _
        // Predicated region
        $region61: #{tpu_custom_call.1} parent=55 // pred_check
          %p562 = pneg %p154
        $region62: #{tpu_custom_call.1} parent=55 // pred_check_branch
          %564 = sbr.rel (%p562) target = $region64
        $region63: #{tpu_custom_call.1} parent=55 // pred_region
          %s565 = sand.u32 %s33, 1
          %s566 = scalar_lea.sflag [#allocation9], %s565
          %s567 = sand.u32 %s139, 1
          %s568 = scalar_lea.vmem [#allocation8], %s567
          %569 = dma.done %s566, 16
        $region64: #{tpu_custom_call.1} parent=55 // pred_fallthru
          _
        // Predicated region
        $region65: #{tpu_custom_call.1} parent=55 // pred_check
          %p570 = pneg %p182
        $region66: #{tpu_custom_call.1} parent=55 // pred_check_branch
          %572 = sbr.rel (%p570) target = $region68
        $region67: #{tpu_custom_call.1} parent=55 // pred_region
          %s573 = sand.u32 %s33, 1
          %s574 = scalar_lea.sflag [#allocation9], %s573
          %s575 = sand.u32 %s167, 1
          %s576 = scalar_lea.vmem [#allocation10], %s575
          %577 = dma.done %s574, 16
        $region68: #{tpu_custom_call.1} parent=55 // pred_fallthru
          _
        // Predicated region
        $region69: #{tpu_custom_call.1} parent=55 // pred_check
          %p578 = pneg %p210
        $region70: #{tpu_custom_call.1} parent=55 // pred_check_branch
          %580 = sbr.rel (%p578) target = $region72
        $region71: #{tpu_custom_call.1} parent=55 // pred_region
          %s581 = sand.u32 %s195, 1
          %s582 = scalar_lea.sflag [#allocation12], %s581
          %s583 = sand.u32 %s195, 1
          %s584 = scalar_lea.vmem [#allocation11], %s583
          %585 = dma.done %s582, 16
        $region72: #{tpu_custom_call.1} parent=55 // pred_fallthru
          _
      $region56: #{tpu_custom_call.1} parent=5 // pred_fallthru
        _
    $region6: #{tpu_custom_call.1} parent=1 // loop_footer
      %s31 = sadd.s32 1, %s27
    $region7: #{tpu_custom_call.1} parent=1 // loop_footer_branch
      %26 = sbr.rel target = $region3
    $region8: #{tpu_custom_call.1} parent=1 // loop_exit
      _
    %586 = vsyncpa [#allocation3], 1
    %s587 = scalar_lea.sflag [#allocation3], 1
    %588 = vsyncpa %s587, 1
    %589 = vsyncpa [#allocation6], 1
    %s590 = scalar_lea.sflag [#allocation6], 1
    %591 = vsyncpa %s590, 1
    %592 = vsyncpa [#allocation4], 1
    %s593 = scalar_lea.sflag [#allocation4], 1
    %594 = vsyncpa %s593, 1
    %595 = vsyncpa [#allocation9], 1
    %s596 = scalar_lea.sflag [#allocation9], 1
    %597 = vsyncpa %s596, 1
    %598 = vsyncpa [#allocation12], 1
    %s599 = scalar_lea.sflag [#allocation12], 1
    %600 = vsyncpa %s599, 1

</llo_original>
